<compile_context>
chip_gen: v5e
topology: v5e:2x2
jax: 0.10.0
libtpu: 0.0.40
codegen_flags: <defaults>
</compile_context>

<pallas_src>
import jax
import jax.numpy as jnp
from jax import lax
from jax.experimental import pallas as pl
from jax.experimental.pallas import tpu as pltpu

_LANE = 128
_UNROLL_FIELDS = 8      # static field unroll up to here; lax.fori_loop beyond


def _cdiv(a, b):
    return (a + b - 1) // b


def _round_up(a, b):
    return _cdiv(a, b) * b


def _sublane_tile(dtype):
    """Native sublane tile: 8 rows for 4-byte dtypes, 16 for 2-byte, 32 for 1-byte."""
    return 8 * (4 // jnp.dtype(dtype).itemsize)


# ---------------------------------------------------------------------------
# Kernels
# ---------------------------------------------------------------------------

def _lane_dense_kernel(x_ref, w_ref, o_ref):
    """Lane-dense path (dim in {16, 32, 64, 128}).

    x_ref / o_ref: (tb, F, R, 128) with R = dim*dim // 128 -- every row uses all
                   128 lanes, so loads/stores are unmasked and blocks carry no
                   lane padding.
    w_ref:         (F, 128, 128), w_ref[i] = I_{128//dim} (x) W_i^T (block diag).
    """
    tb, f, r, lane = x_ref.shape

    def one_field(i):
        xi = x_ref[:, i, :, :].reshape(tb * r, lane)     # leading dims only: free
        yi = jnp.dot(xi, w_ref[i], preferred_element_type=jnp.float32)
        o_ref[:, i, :, :] = yi.reshape(tb, r, lane).astype(o_ref.dtype)

    if f <= _UNROLL_FIELDS:
        for i in range(f):                               # small & static -> unrolled
            one_field(i)
    else:
        def body(i, carry):                              # bounds live ranges for many fields
            one_field(i)
            return carry
        lax.fori_loop(0, f, body, 0)


def _generic_kernel(x_ref, w_ref, o_ref):
    """Generic path: x_ref / o_ref (tb, F*D, D); w_ref (F, D, D), w_ref[i] = W_i^T.

    Optimal when D % 128 == 0 (already lane-dense); for other D the last dim is
    lane-padded in VMEM (accounted for in the wrapper's VMEM budget).
    """
    tb = x_ref.shape[0]
    f, d, _ = w_ref.shape

    def one_field(i, start):
        xi = x_ref[:, pl.ds(start, d), :].reshape(tb * d, d)   # leading dims only
        yi = jnp.dot(xi, w_ref[i], preferred_element_type=jnp.float32)
        o_ref[:, pl.ds(start, d), :] = yi.reshape(tb, d, d).astype(o_ref.dtype)

    if f <= _UNROLL_FIELDS:
        for i in range(f):
            one_field(i, i * d)
    else:
        def body(i, carry):
            one_field(i, pl.multiple_of(i * d, d))
            return carry
        lax.fori_loop(0, f, body, 0)


# ---------------------------------------------------------------------------
# Wrapper
# ---------------------------------------------------------------------------

def multi_mlp_emb(x, w_stack, *, vmem_budget_bytes=24 * 1024 * 1024,
                  batch_tile=None):
    """MultiMLPEmb forward: out[:, i*D:(i+1)*D, :] = x[:, i*D:(i+1)*D, :] @ W_i.T.

    x:        [B, field_num*dim, dim]
    w_stack:  [field_num, dim, dim]; w_stack[i] == proj[i].weight (PyTorch layout)
    vmem_budget_bytes: cap on live pipelined VMEM (padded accounting).  The
        24 MiB default is safe on v5e/v6e/v7x; on v6e (128 MiB VMEM) it can be
        raised to ~48-64 MiB for slightly larger tiles.
    batch_tile: optional explicit batch-tile override (clamped to the
        VMEM-derived maximum).

    dtype-generic; feed bf16 x / weights (recommended on v5e) to halve HBM
    traffic on this HBM-bound kernel.  Accumulation is always f32.
    """
    B, FD, D = map(int, x.shape)
    F = int(w_stack.shape[0])
    assert FD == F * D, "second axis of x must be field_num * dim"
    assert tuple(w_stack.shape) == (F, D, D)
    # TODO(synk): bias is unsupported (the PyTorch module uses bias=False).

    x_item = jnp.dtype(x.dtype).itemsize
    w_item = jnp.dtype(w_stack.dtype).itemsize
    sub_x = _sublane_tile(x.dtype)
    sub_w = _sublane_tile(w_stack.dtype)

    # y_i = x_i @ W_i.T == x_i @ w_t[i],  w_t[i] = W_i^T  (D_in, D_out)
    w_t = jnp.swapaxes(w_stack, 1, 2)

    lane_dense = (_LANE % D == 0) and ((D * D) % _LANE == 0)   # D in {16,32,64,128}

    if lane_dense:
        G = _LANE // D                      # x-rows packed per 128-lane row
        R = (D * D) // _LANE                # 128-lane rows per (batch row, field)
        # Block-diagonal weights I_G (x) W_i^T: per-field matmul becomes a dense
        # 128-wide contraction emitting the lane-dense output directly (no
        # masked stores, no narrow MXU feeds).  Gx extra MACs are free.
        eye = jnp.eye(G, dtype=w_t.dtype)
        w_call = jnp.einsum("gh,fdn->fgdhn", eye, w_t).reshape(F, _LANE, _LANE)
        x_call = x.reshape(B, F, R, _LANE)  # free: data already contiguous
        kernel = _lane_dense_kernel
        block_tail = (F, R, _LANE)
        w_block = (F, _LANE, _LANE)
        out_struct = jax.ShapeDtypeStruct((B, F, R, _LANE), x.dtype)
        # Padded VMEM footprint of one batch row of an x/out block.
        row_pad_bytes = F * _round_up(R, sub_x) * _LANE * x_item
        w_pad_bytes = F * _LANE * _LANE * w_item
    else:
        w_call = w_t
        x_call = x
        kernel = _generic_kernel
        block_tail = (FD, D)
        w_block = (F, D, D)
        out_struct = jax.ShapeDtypeStruct((B, FD, D), x.dtype)
        row_pad_bytes = _round_up(FD, sub_x) * _round_up(D, _LANE) * x_item
        w_pad_bytes = F * _round_up(D, sub_w) * _round_up(D, _LANE) * w_item

    # ---- batch tile from the PADDED footprint; keep the pipeline busy ----
    # Live VMEM = x block + out block (each double-buffered) + 2 weight buffers
    # (the constant-index weight block still gets two buffers by default; we
    # charge them here instead of risking pl.Buffered(1)).
    avail = max(row_pad_bytes, vmem_budget_bytes - 2 * w_pad_bytes)
    max_tb = max(1, min(B, avail // (4 * row_pad_bytes)))
    if batch_tile is not None:
        tb = max(1, min(int(batch_tile), max_tb))
    else:
        steps = _cdiv(B, max_tb)            # minimum forced by the VMEM budget
        # Target >=4 grid steps (so BlockSpec double-buffering overlaps DMA with
        # compute) with an even count (balanced over v7x's two TensorCores), but
        # never shrink a step below ~1 MiB of real in+out traffic.
        row_real_bytes = 2 * F * D * D * x_item
        max_useful_steps = max(1, (B * row_real_bytes) // (1 << 20))
        steps = max(steps, min(4, max_useful_steps, B))
        if steps > 1 and steps % 2 == 1 and steps < B:
            steps += 1
        tb = _cdiv(B, steps)
    grid_m = _cdiv(B, tb)

    # Explicit scoped-VMEM limit from the real padded footprint (+ headroom),
    # instead of relying on per-generation scoped defaults.
    vmem_need = 4 * tb * row_pad_bytes + 2 * w_pad_bytes
    vmem_limit = int(max(vmem_need + (4 << 20), 16 << 20))

    cost = pl.CostEstimate(
        flops=2 * B * F * D * D * D,
        transcendentals=0,
        bytes_accessed=2 * B * F * D * D * x_item + F * D * D * w_item,
    )

    x_block = (tb,) + block_tail
    ndim_x = len(x_block)

    out = pl.pallas_call(
        kernel,
        out_shape=out_struct,
        grid_spec=pltpu.PrefetchScalarGridSpec(
            num_scalar_prefetch=0,
            grid=(grid_m,),
            in_specs=[
                # Contiguous, lane-dense batch-tile slab of x.
                pl.BlockSpec(x_block, lambda m: (m,) + (0,) * (ndim_x - 1)),
                # Full weight stack; constant index -> DMA'd once, stays resident.
                pl.BlockSpec(w_block, lambda m: (0, 0, 0)),
            ],
            out_specs=pl.BlockSpec(x_block, lambda m: (m,) + (0,) * (ndim_x - 1)),
        ),
        compiler_params=pltpu.CompilerParams(
            dimension_semantics=("parallel",),
            vmem_limit_bytes=vmem_limit,
        ),
        cost_estimate=cost,
    )(x_call, w_call)

    if lane_dense:
        out = out.reshape(B, FD, D)         # restore the module's output layout (free)
    return out


def reference_multi_mlp_emb(x, w_stack):
    """Pure-JAX reference of the PyTorch per-field loop (f32 math)."""
    B, FD, D = x.shape
    F = w_stack.shape[0]
    xf = x.astype(jnp.float32).reshape(B, F, D, D)
    wf = w_stack.astype(jnp.float32)
    out = jnp.einsum("bfmd,fnd->bfmn", xf, wf, precision=lax.Precision.HIGHEST)
    return out.reshape(B, FD, D)


if __name__ == "__main__":
    def make_inputs(key, B, F, D):
        kx, kw = jax.random.split(key)
        x = jax.random.normal(kx, (B, F * D, D), dtype=jnp.float32)
        bound = 1.0 / float(D) ** 0.5       # torch Linear(bias=False) default init
        w = jax.random.uniform(kw, (F, D, D), dtype=jnp.float32,
                               minval=-bound, maxval=bound)
        return x, w

    k1, k2 = jax.random.split(jax.random.PRNGKey(0))

    # 1) Module-sized config (field_num=4, dim=32, batch=2): lane-dense path, f32.
    x, w = make_inputs(k1, B=2, F=4, D=32)
    out = jax.block_until_ready(multi_mlp_emb(x, w))
    ref = reference_multi_mlp_emb(x, w)
    assert out.shape == x.shape and out.dtype == x.dtype
    assert jnp.allclose(out, ref, atol=1e-4, rtol=1e-4)

    # 2) bf16 inputs (recommended on v5e: halves HBM traffic; f32 accumulation).
    x_bf, w_bf = x.astype(jnp.bfloat16), w.astype(jnp.bfloat16)
    out_bf = jax.block_until_ready(multi_mlp_emb(x_bf, w_bf))
    ref_bf = reference_multi_mlp_emb(x_bf, w_bf)
    assert out_bf.dtype == jnp.bfloat16
    assert jnp.allclose(out_bf.astype(jnp.float32), ref_bf, atol=5e-2, rtol=5e-2)

    # 3) Multi-step pipelined grid with a partial final batch tile (explicit
    #    batch_tile keeps 4 even grid steps even at toy scale).
    x3, w3 = make_inputs(k2, B=18, F=6, D=32)
    out3 = jax.block_until_ready(multi_mlp_emb(x3, w3, batch_tile=5))
    ref3 = reference_multi_mlp_emb(x3, w3)
    assert jnp.allclose(out3, ref3, atol=1e-4, rtol=1e-4)

    print("KERNEL_OK")
</pallas_src>

<mosaic_0001>
module attributes {stable_mosaic.version = 11 : i64} {
  func.func @_lane_dense_kernel(%arg0: i32, %arg1: memref<2x4x8x128xf32, #tpu.memory_space<vmem>>, %arg2: memref<4x128x128xf32, #tpu.memory_space<vmem>>, %arg3: memref<2x4x8x128xf32, #tpu.memory_space<vmem>>) attributes {dimension_semantics = [#tpu.dimension_semantics<parallel>], iteration_bounds = array<i64: 1>, scalar_prefetch = 0 : i64, scratch_operands = 0 : i64, tpu.core_type = #tpu.core_type<tc>, window_params = [{transform_indices = @transform_0, window_bounds = array<i64: 2, 4, 8, 128>}, {pipeline_mode = #tpu.pipeline_mode<synchronous>, transform_indices = @transform_1, window_bounds = array<i64: 4, 128, 128>}, {transform_indices = @transform_2, window_bounds = array<i64: 2, 4, 8, 128>}]} {
    %c0 = arith.constant 0 : index
    %c0_0 = arith.constant 0 : index
    %c0_1 = arith.constant 0 : index
    %c0_2 = arith.constant 0 : index
    %0 = vector.load %arg1[%c0, %c0_0, %c0_1, %c0_2] : memref<2x4x8x128xf32, #tpu.memory_space<vmem>>, vector<2x1x8x128xf32>
    %1 = vector.shape_cast %0 : vector<2x1x8x128xf32> to vector<2x8x128xf32>
    %2 = vector.shape_cast %1 : vector<2x8x128xf32> to vector<16x128xf32>
    %c0_3 = arith.constant 0 : index
    %c0_4 = arith.constant 0 : index
    %c0_5 = arith.constant 0 : index
    %3 = vector.load %arg2[%c0_3, %c0_4, %c0_5] : memref<4x128x128xf32, #tpu.memory_space<vmem>>, vector<1x128x128xf32>
    %4 = vector.shape_cast %3 : vector<1x128x128xf32> to vector<128x128xf32>
    %cst = arith.constant dense<0.000000e+00> : vector<16x128xf32>
    %5 = tpu.matmul %2, %4, %cst {dimension_numbers = #tpu.dot_dimension_numbers<[1], [0], [0], [1], [0, 0, 1, 1], [], []>} : vector<16x128xf32>, vector<128x128xf32>, vector<16x128xf32> -> vector<16x128xf32>
    %6 = vector.shape_cast %5 : vector<16x128xf32> to vector<2x8x128xf32>
    %c0_6 = arith.constant 0 : index
    %c0_7 = arith.constant 0 : index
    %c0_8 = arith.constant 0 : index
    %c0_9 = arith.constant 0 : index
    %7 = vector.load %arg3[%c0_6, %c0_7, %c0_8, %c0_9] : memref<2x4x8x128xf32, #tpu.memory_space<vmem>>, vector<2x1x8x128xf32>
    %8 = vector.shape_cast %7 : vector<2x1x8x128xf32> to vector<2x8x128xf32>
    %9 = vector.shape_cast %6 : vector<2x8x128xf32> to vector<2x1x8x128xf32>
    tpu.vector_store %arg3[%c0_6, %c0_7, %c0_8, %c0_9], %9 {strides = array<i32>} : memref<2x4x8x128xf32, #tpu.memory_space<vmem>>, vector<2x1x8x128xf32>,
    %c0_10 = arith.constant 0 : index
    %c1 = arith.constant 1 : index
    %c0_11 = arith.constant 0 : index
    %c0_12 = arith.constant 0 : index
    %10 = vector.load %arg1[%c0_10, %c1, %c0_11, %c0_12] : memref<2x4x8x128xf32, #tpu.memory_space<vmem>>, vector<2x1x8x128xf32>
    %11 = vector.shape_cast %10 : vector<2x1x8x128xf32> to vector<2x8x128xf32>
    %12 = vector.shape_cast %11 : vector<2x8x128xf32> to vector<16x128xf32>
    %c1_13 = arith.constant 1 : index
    %c0_14 = arith.constant 0 : index
    %c0_15 = arith.constant 0 : index
    %13 = vector.load %arg2[%c1_13, %c0_14, %c0_15] : memref<4x128x128xf32, #tpu.memory_space<vmem>>, vector<1x128x128xf32>
    %14 = vector.shape_cast %13 : vector<1x128x128xf32> to vector<128x128xf32>
    %cst_16 = arith.constant dense<0.000000e+00> : vector<16x128xf32>
    %15 = tpu.matmul %12, %14, %cst_16 {dimension_numbers = #tpu.dot_dimension_numbers<[1], [0], [0], [1], [0, 0, 1, 1], [], []>} : vector<16x128xf32>, vector<128x128xf32>, vector<16x128xf32> -> vector<16x128xf32>
    %16 = vector.shape_cast %15 : vector<16x128xf32> to vector<2x8x128xf32>
    %c0_17 = arith.constant 0 : index
    %c1_18 = arith.constant 1 : index
    %c0_19 = arith.constant 0 : index
    %c0_20 = arith.constant 0 : index
    %17 = vector.load %arg3[%c0_17, %c1_18, %c0_19, %c0_20] : memref<2x4x8x128xf32, #tpu.memory_space<vmem>>, vector<2x1x8x128xf32>
    %18 = vector.shape_cast %17 : vector<2x1x8x128xf32> to vector<2x8x128xf32>
    %19 = vector.shape_cast %16 : vector<2x8x128xf32> to vector<2x1x8x128xf32>
    tpu.vector_store %arg3[%c0_17, %c1_18, %c0_19, %c0_20], %19 {strides = array<i32>} : memref<2x4x8x128xf32, #tpu.memory_space<vmem>>, vector<2x1x8x128xf32>,
    %c0_21 = arith.constant 0 : index
    %c2 = arith.constant 2 : index
    %c0_22 = arith.constant 0 : index
    %c0_23 = arith.constant 0 : index
    %20 = vector.load %arg1[%c0_21, %c2, %c0_22, %c0_23] : memref<2x4x8x128xf32, #tpu.memory_space<vmem>>, vector<2x1x8x128xf32>
    %21 = vector.shape_cast %20 : vector<2x1x8x128xf32> to vector<2x8x128xf32>
    %22 = vector.shape_cast %21 : vector<2x8x128xf32> to vector<16x128xf32>
    %c2_24 = arith.constant 2 : index
    %c0_25 = arith.constant 0 : index
    %c0_26 = arith.constant 0 : index
    %23 = vector.load %arg2[%c2_24, %c0_25, %c0_26] : memref<4x128x128xf32, #tpu.memory_space<vmem>>, vector<1x128x128xf32>
    %24 = vector.shape_cast %23 : vector<1x128x128xf32> to vector<128x128xf32>
    %cst_27 = arith.constant dense<0.000000e+00> : vector<16x128xf32>
    %25 = tpu.matmul %22, %24, %cst_27 {dimension_numbers = #tpu.dot_dimension_numbers<[1], [0], [0], [1], [0, 0, 1, 1], [], []>} : vector<16x128xf32>, vector<128x128xf32>, vector<16x128xf32> -> vector<16x128xf32>
    %26 = vector.shape_cast %25 : vector<16x128xf32> to vector<2x8x128xf32>
    %c0_28 = arith.constant 0 : index
    %c2_29 = arith.constant 2 : index
    %c0_30 = arith.constant 0 : index
    %c0_31 = arith.constant 0 : index
    %27 = vector.load %arg3[%c0_28, %c2_29, %c0_30, %c0_31] : memref<2x4x8x128xf32, #tpu.memory_space<vmem>>, vector<2x1x8x128xf32>
    %28 = vector.shape_cast %27 : vector<2x1x8x128xf32> to vector<2x8x128xf32>
    %29 = vector.shape_cast %26 : vector<2x8x128xf32> to vector<2x1x8x128xf32>
    tpu.vector_store %arg3[%c0_28, %c2_29, %c0_30, %c0_31], %29 {strides = array<i32>} : memref<2x4x8x128xf32, #tpu.memory_space<vmem>>, vector<2x1x8x128xf32>,
    %c0_32 = arith.constant 0 : index
    %c3 = arith.constant 3 : index
    %c0_33 = arith.constant 0 : index
    %c0_34 = arith.constant 0 : index
    %30 = vector.load %arg1[%c0_32, %c3, %c0_33, %c0_34] : memref<2x4x8x128xf32, #tpu.memory_space<vmem>>, vector<2x1x8x128xf32>
    %31 = vector.shape_cast %30 : vector<2x1x8x128xf32> to vector<2x8x128xf32>
    %32 = vector.shape_cast %31 : vector<2x8x128xf32> to vector<16x128xf32>
    %c3_35 = arith.constant 3 : index
    %c0_36 = arith.constant 0 : index
    %c0_37 = arith.constant 0 : index
    %33 = vector.load %arg2[%c3_35, %c0_36, %c0_37] : memref<4x128x128xf32, #tpu.memory_space<vmem>>, vector<1x128x128xf32>
    %34 = vector.shape_cast %33 : vector<1x128x128xf32> to vector<128x128xf32>
    %cst_38 = arith.constant dense<0.000000e+00> : vector<16x128xf32>
    %35 = tpu.matmul %32, %34, %cst_38 {dimension_numbers = #tpu.dot_dimension_numbers<[1], [0], [0], [1], [0, 0, 1, 1], [], []>} : vector<16x128xf32>, vector<128x128xf32>, vector<16x128xf32> -> vector<16x128xf32>
    %36 = vector.shape_cast %35 : vector<16x128xf32> to vector<2x8x128xf32>
    %c0_39 = arith.constant 0 : index
    %c3_40 = arith.constant 3 : index
    %c0_41 = arith.constant 0 : index
    %c0_42 = arith.constant 0 : index
    %37 = vector.load %arg3[%c0_39, %c3_40, %c0_41, %c0_42] : memref<2x4x8x128xf32, #tpu.memory_space<vmem>>, vector<2x1x8x128xf32>
    %38 = vector.shape_cast %37 : vector<2x1x8x128xf32> to vector<2x8x128xf32>
    %39 = vector.shape_cast %36 : vector<2x8x128xf32> to vector<2x1x8x128xf32>
    tpu.vector_store %arg3[%c0_39, %c3_40, %c0_41, %c0_42], %39 {strides = array<i32>} : memref<2x4x8x128xf32, #tpu.memory_space<vmem>>, vector<2x1x8x128xf32>,
    return
  }
  func.func @transform_0(%arg0: i32) -> (i32, i32, i32, i32) {
    %c0_i32 = arith.constant 0 : i32
    %c0_i32_0 = arith.constant 0 : i32
    %c0_i32_1 = arith.constant 0 : i32
    %c0_i32_2 = arith.constant 0 : i32
    return %arg0, %c0_i32, %c0_i32_0, %c0_i32_1 : i32, i32, i32, i32
  }
  func.func @transform_1(%arg0: i32) -> (i32, i32, i32) {
    %c0_i32 = arith.constant 0 : i32
    %c0_i32_0 = arith.constant 0 : i32
    %c0_i32_1 = arith.constant 0 : i32
    %c0_i32_2 = arith.constant 0 : i32
    return %c0_i32, %c0_i32_0, %c0_i32_1 : i32, i32, i32
  }
  func.func @transform_2(%arg0: i32) -> (i32, i32, i32, i32) {
    %c0_i32 = arith.constant 0 : i32
    %c0_i32_0 = arith.constant 0 : i32
    %c0_i32_1 = arith.constant 0 : i32
    %c0_i32_2 = arith.constant 0 : i32
    return %arg0, %c0_i32, %c0_i32_0, %c0_i32_1 : i32, i32, i32, i32
  }
}

</mosaic_0001>

<llo_original>
// kernel: tpu_custom_call.1
$region0: #{tpu_custom_call.1}
  #allocation0 [shape = 'u32[]', space=smem, size = 0x4, offset = 0x4, fixed_abs, tag = 'smem constant byte address 0x4 - core index']
  #allocation1 [shape = 'u32[72,128]{1,0:T(1,128)}', space=vmem, size = 0x9000, scoped, tag = 'internal scratch']
  %s0 = inlined_call_operand.hbm [shape: f32[2,4,8,128], index: 0, kind: input, shape index: {}]
  %s1 = inlined_call_operand.hbm [shape: f32[4,128,128], index: 1, kind: input, shape index: {}]
  %s2 = inlined_call_operand.hbm [shape: f32[2,4,8,128], index: 2, kind: output, shape index: {}]
  %s3 = sld [smem:[#allocation0]]
  $region26: #{tpu_custom_call.1} parent=0
    _
  %s5 = ssub.s32 1, %s3
  %s6 = scalar_select 0, %s5, %s3
  $region1: #{tpu_custom_call.1} parent=0
    #allocation2 [shape = 'u8[32768]{0}', space=vmem, size = 0x8000, scoped, tag = 'input window, operand 0, single buffered']
    #allocation3 [shape = 's32[1]{0}', space=sflag, size = 0x4, scoped, tag = 'scoped memory for tpu_custom_call.1']
    #allocation4 [shape = 's32[1]{0}', space=sflag, size = 0x4, scoped, tag = 'scoped memory for tpu_custom_call.1']
    #allocation5 [shape = 'u8[262144]{0}', space=vmem, size = 0x40000, scoped, tag = 'input window, operand 1, single buffered']
    #allocation6 [shape = 's32[1]{0}', space=sflag, size = 0x4, scoped, tag = 'scoped memory for tpu_custom_call.1']
    #allocation7 [shape = 'u8[32768]{0}', space=vmem, size = 0x8000, scoped, tag = 'output window, operand 0, single buffered']
    %7 = vsyncpa [#allocation3], 0
    %8 = vsyncpa [#allocation6], 0
    %9 = vsyncpa [#allocation4], 0
    // Predicated region
    $region2: #{tpu_custom_call.1} parent=1 // pred_check
      _
    $region3: #{tpu_custom_call.1} parent=1 // pred_check_branch
      %11 = sbr.rel (0) target = $region5
    $region4: #{tpu_custom_call.1} parent=1 // pred_region
      %13 = vsyncadd [#allocation3], 0
      %s14 = sshll.u32 %s0, 4
      %s15 = int_to_ptr.hbm [resolvable:$true] %s14
      %s16 = sshll.u32 [#allocation2], 4
      %s17 = int_to_ptr.vmem [resolvable:$true] %s16
      %22 = dma.hbm_to_vmem [thread:$0]  %s15, 1024, %s17, [#allocation3], 128, 128, 8
    $region5: #{tpu_custom_call.1} parent=1 // pred_fallthru
      _
    // Predicated region
    $region6: #{tpu_custom_call.1} parent=1 // pred_check
      _
    $region7: #{tpu_custom_call.1} parent=1 // pred_check_branch
      %24 = sbr.rel (0) target = $region9
    $region8: #{tpu_custom_call.1} parent=1 // pred_region
      %26 = vsyncadd [#allocation6], 0
      %s27 = sshll.u32 %s1, 4
      %s28 = int_to_ptr.hbm [resolvable:$true] %s27
      %s29 = sshll.u32 [#allocation5], 4
      %s30 = int_to_ptr.vmem [resolvable:$true] %s29
      %35 = dma.hbm_to_vmem [thread:$0]  %s28, 8192, %s30, [#allocation6], 128, 128, 8
    $region9: #{tpu_custom_call.1} parent=1 // pred_fallthru
      _
    // Predicated region
    $region10: #{tpu_custom_call.1} parent=1 // pred_check
      _
    $region11: #{tpu_custom_call.1} parent=1 // pred_check_branch
      %37 = sbr.rel (0) target = $region13
    $region12: #{tpu_custom_call.1} parent=1 // pred_region
      %39 = dma.done [#allocation3], 1024
    $region13: #{tpu_custom_call.1} parent=1 // pred_fallthru
      _
    // Predicated region
    $region14: #{tpu_custom_call.1} parent=1 // pred_check
      _
    $region15: #{tpu_custom_call.1} parent=1 // pred_check_branch
      %41 = sbr.rel (0) target = $region17
    $region16: #{tpu_custom_call.1} parent=1 // pred_region
      %43 = dma.done [#allocation6], 8192
    $region17: #{tpu_custom_call.1} parent=1 // pred_fallthru
      _
    %v44 = vld [vmem:[#allocation2] sm:$0xff]
    %v45 = vld [vmem:[#allocation2 + $0x20] sm:$0xff]
    %v46 = vld [vmem:[#allocation5] sm:$0xff]
    %v47 = vld [vmem:[#allocation5 + $0x8] sm:$0xff]
    %v48 = vld [vmem:[#allocation5 + $0x10] sm:$0xff]
    %v49 = vld [vmem:[#allocation5 + $0x18] sm:$0xff]
    %v50 = vld [vmem:[#allocation5 + $0x20] sm:$0xff]
    %v51 = vld [vmem:[#allocation5 + $0x28] sm:$0xff]
    %v52 = vld [vmem:[#allocation5 + $0x30] sm:$0xff]
    %v53 = vld [vmem:[#allocation5 + $0x38] sm:$0xff]
    %v54 = vld [vmem:[#allocation5 + $0x40] sm:$0xff]
    %v55 = vld [vmem:[#allocation5 + $0x48] sm:$0xff]
    %v56 = vld [vmem:[#allocation5 + $0x50] sm:$0xff]
    %v57 = vld [vmem:[#allocation5 + $0x58] sm:$0xff]
    %v58 = vld [vmem:[#allocation5 + $0x60] sm:$0xff]
    %v59 = vld [vmem:[#allocation5 + $0x68] sm:$0xff]
    %v60 = vld [vmem:[#allocation5 + $0x70] sm:$0xff]
    %v61 = vld [vmem:[#allocation5 + $0x78] sm:$0xff]
    %62 = vmatpush.msra.mxu0 %v61
    %63 = vmatpush.msra.mxu0 %v60
    %64 = vmatpush.msra.mxu0 %v59
    %65 = vmatpush.msra.mxu0 %v58
    %66 = vmatpush.msra.mxu0 %v57
    %67 = vmatpush.msra.mxu0 %v56
    %68 = vmatpush.msra.mxu0 %v55
    %69 = vmatpush.msra.mxu0 %v54
    %70 = vmatpush.msra.mxu0 %v53
    %71 = vmatpush.msra.mxu0 %v52
    %72 = vmatpush.msra.mxu0 %v51
    %73 = vmatpush.msra.mxu0 %v50
    %74 = vmatpush.msra.mxu0 %v49
    %75 = vmatpush.msra.mxu0 %v48
    %76 = vmatpush.msra.mxu0 %v47
    %77 = vmatpush.msra.mxu0 %v46
    %78 = vmatmul.f32.gmra.mxu0 %v44
    %v79 = vpop.f32.mrf.mxu0
    %v80 = vadd.f32 0.0, %v79
    %81 = vmatmul.f32.gmra.mxu0 %v45
    %v82 = vpop.f32.mrf.mxu0
    %v83 = vadd.f32 0.0, %v82
    %84 = vdwg.mxu0
    %85 = vst [vmem:[#allocation7] sm:$0xff] %v80
    %86 = vst [vmem:[#allocation7 + $0x20] sm:$0xff] %v83
    %s87 = scalar_lea.vmem [#allocation2], 8
    %v88 = vld [vmem:[%s87] sm:$0xff]
    %v89 = vld [vmem:[%s87 + $0x20] sm:$0xff]
    %s90 = scalar_lea.vmem [#allocation5], 128
    %v91 = vld [vmem:[%s90] sm:$0xff]
    %v92 = vld [vmem:[%s90 + $0x8] sm:$0xff]
    %v93 = vld [vmem:[%s90 + $0x10] sm:$0xff]
    %v94 = vld [vmem:[%s90 + $0x18] sm:$0xff]
    %v95 = vld [vmem:[%s90 + $0x20] sm:$0xff]
    %v96 = vld [vmem:[%s90 + $0x28] sm:$0xff]
    %v97 = vld [vmem:[%s90 + $0x30] sm:$0xff]
    %v98 = vld [vmem:[%s90 + $0x38] sm:$0xff]
    %v99 = vld [vmem:[%s90 + $0x40] sm:$0xff]
    %v100 = vld [vmem:[%s90 + $0x48] sm:$0xff]
    %v101 = vld [vmem:[%s90 + $0x50] sm:$0xff]
    %v102 = vld [vmem:[%s90 + $0x58] sm:$0xff]
    %v103 = vld [vmem:[%s90 + $0x60] sm:$0xff]
    %v104 = vld [vmem:[%s90 + $0x68] sm:$0xff]
    %v105 = vld [vmem:[%s90 + $0x70] sm:$0xff]
    %v106 = vld [vmem:[%s90 + $0x78] sm:$0xff]
    %107 = vmatpush.msra.mxu0 %v106
    %108 = vmatpush.msra.mxu0 %v105
    %109 = vmatpush.msra.mxu0 %v104
    %110 = vmatpush.msra.mxu0 %v103
    %111 = vmatpush.msra.mxu0 %v102
    %112 = vmatpush.msra.mxu0 %v101
    %113 = vmatpush.msra.mxu0 %v100
    %114 = vmatpush.msra.mxu0 %v99
    %115 = vmatpush.msra.mxu0 %v98
    %116 = vmatpush.msra.mxu0 %v97
    %117 = vmatpush.msra.mxu0 %v96
    %118 = vmatpush.msra.mxu0 %v95
    %119 = vmatpush.msra.mxu0 %v94
    %120 = vmatpush.msra.mxu0 %v93
    %121 = vmatpush.msra.mxu0 %v92
    %122 = vmatpush.msra.mxu0 %v91
    %123 = vmatmul.f32.gmra.mxu0 %v88
    %v124 = vpop.f32.mrf.mxu0
    %v125 = vadd.f32 0.0, %v124
    %126 = vmatmul.f32.gmra.mxu0 %v89
    %v127 = vpop.f32.mrf.mxu0
    %v128 = vadd.f32 0.0, %v127
    %129 = vdwg.mxu0
    %s130 = scalar_lea.vmem [#allocation7], 8
    %131 = vst [vmem:[%s130] sm:$0xff] %v125
    %132 = vst [vmem:[%s130 + $0x20] sm:$0xff] %v128
    %s133 = scalar_lea.vmem [#allocation2], 16
    %v134 = vld [vmem:[%s133] sm:$0xff]
    %v135 = vld [vmem:[%s133 + $0x20] sm:$0xff]
    %s136 = scalar_lea.vmem [#allocation5], 256
    %v137 = vld [vmem:[%s136] sm:$0xff]
    %v138 = vld [vmem:[%s136 + $0x8] sm:$0xff]
    %v139 = vld [vmem:[%s136 + $0x10] sm:$0xff]
    %v140 = vld [vmem:[%s136 + $0x18] sm:$0xff]
    %v141 = vld [vmem:[%s136 + $0x20] sm:$0xff]
    %v142 = vld [vmem:[%s136 + $0x28] sm:$0xff]
    %v143 = vld [vmem:[%s136 + $0x30] sm:$0xff]
    %v144 = vld [vmem:[%s136 + $0x38] sm:$0xff]
    %v145 = vld [vmem:[%s136 + $0x40] sm:$0xff]
    %v146 = vld [vmem:[%s136 + $0x48] sm:$0xff]
    %v147 = vld [vmem:[%s136 + $0x50] sm:$0xff]
    %v148 = vld [vmem:[%s136 + $0x58] sm:$0xff]
    %v149 = vld [vmem:[%s136 + $0x60] sm:$0xff]
    %v150 = vld [vmem:[%s136 + $0x68] sm:$0xff]
    %v151 = vld [vmem:[%s136 + $0x70] sm:$0xff]
    %v152 = vld [vmem:[%s136 + $0x78] sm:$0xff]
    %153 = vmatpush.msra.mxu0 %v152
    %154 = vmatpush.msra.mxu0 %v151
    %155 = vmatpush.msra.mxu0 %v150
    %156 = vmatpush.msra.mxu0 %v149
    %157 = vmatpush.msra.mxu0 %v148
    %158 = vmatpush.msra.mxu0 %v147
    %159 = vmatpush.msra.mxu0 %v146
    %160 = vmatpush.msra.mxu0 %v145
    %161 = vmatpush.msra.mxu0 %v144
    %162 = vmatpush.msra.mxu0 %v143
    %163 = vmatpush.msra.mxu0 %v142
    %164 = vmatpush.msra.mxu0 %v141
    %165 = vmatpush.msra.mxu0 %v140
    %166 = vmatpush.msra.mxu0 %v139
    %167 = vmatpush.msra.mxu0 %v138
    %168 = vmatpush.msra.mxu0 %v137
    %169 = vmatmul.f32.gmra.mxu0 %v134
    %v170 = vpop.f32.mrf.mxu0
    %v171 = vadd.f32 0.0, %v170
    %172 = vmatmul.f32.gmra.mxu0 %v135
    %v173 = vpop.f32.mrf.mxu0
    %v174 = vadd.f32 0.0, %v173
    %175 = vdwg.mxu0
    %s176 = scalar_lea.vmem [#allocation7], 16
    %177 = vst [vmem:[%s176] sm:$0xff] %v171
    %178 = vst [vmem:[%s176 + $0x20] sm:$0xff] %v174
    %s179 = scalar_lea.vmem [#allocation2], 24
    %v180 = vld [vmem:[%s179] sm:$0xff]
    %v181 = vld [vmem:[%s179 + $0x20] sm:$0xff]
    %s182 = scalar_lea.vmem [#allocation5], 384
    %v183 = vld [vmem:[%s182] sm:$0xff]
    %v184 = vld [vmem:[%s182 + $0x8] sm:$0xff]
    %v185 = vld [vmem:[%s182 + $0x10] sm:$0xff]
    %v186 = vld [vmem:[%s182 + $0x18] sm:$0xff]
    %v187 = vld [vmem:[%s182 + $0x20] sm:$0xff]
    %v188 = vld [vmem:[%s182 + $0x28] sm:$0xff]
    %v189 = vld [vmem:[%s182 + $0x30] sm:$0xff]
    %v190 = vld [vmem:[%s182 + $0x38] sm:$0xff]
    %v191 = vld [vmem:[%s182 + $0x40] sm:$0xff]
    %v192 = vld [vmem:[%s182 + $0x48] sm:$0xff]
    %v193 = vld [vmem:[%s182 + $0x50] sm:$0xff]
    %v194 = vld [vmem:[%s182 + $0x58] sm:$0xff]
    %v195 = vld [vmem:[%s182 + $0x60] sm:$0xff]
    %v196 = vld [vmem:[%s182 + $0x68] sm:$0xff]
    %v197 = vld [vmem:[%s182 + $0x70] sm:$0xff]
    %v198 = vld [vmem:[%s182 + $0x78] sm:$0xff]
    %199 = vmatpush.msra.mxu0 %v198
    %200 = vmatpush.msra.mxu0 %v197
    %201 = vmatpush.msra.mxu0 %v196
    %202 = vmatpush.msra.mxu0 %v195
    %203 = vmatpush.msra.mxu0 %v194
    %204 = vmatpush.msra.mxu0 %v193
    %205 = vmatpush.msra.mxu0 %v192
    %206 = vmatpush.msra.mxu0 %v191
    %207 = vmatpush.msra.mxu0 %v190
    %208 = vmatpush.msra.mxu0 %v189
    %209 = vmatpush.msra.mxu0 %v188
    %210 = vmatpush.msra.mxu0 %v187
    %211 = vmatpush.msra.mxu0 %v186
    %212 = vmatpush.msra.mxu0 %v185
    %213 = vmatpush.msra.mxu0 %v184
    %214 = vmatpush.msra.mxu0 %v183
    %215 = vmatmul.f32.gmra.mxu0 %v180
    %v216 = vpop.f32.mrf.mxu0
    %v217 = vadd.f32 0.0, %v216
    %218 = vmatmul.f32.gmra.mxu0 %v181
    %v219 = vpop.f32.mrf.mxu0
    %v220 = vadd.f32 0.0, %v219
    %221 = vdwg.mxu0
    %s222 = scalar_lea.vmem [#allocation7], 24
    %223 = vst [vmem:[%s222] sm:$0xff] %v217
    %224 = vst [vmem:[%s222 + $0x20] sm:$0xff] %v220
    // Predicated region
    $region18: #{tpu_custom_call.1} parent=1 // pred_check
      _
    $region19: #{tpu_custom_call.1} parent=1 // pred_check_branch
      %226 = sbr.rel (0) target = $region21
    $region20: #{tpu_custom_call.1} parent=1 // pred_region
      %228 = vsyncadd [#allocation4], 0
      %s229 = sshll.u32 [#allocation7], 4
      %s230 = int_to_ptr.vmem [resolvable:$true] %s229
      %s231 = sshll.u32 %s2, 4
      %s232 = int_to_ptr.hbm [resolvable:$true] %s231
      %237 = dma.vmem_to_hbm [thread:$0]  %s230, 1024, %s232, [#allocation4], 128, 128, 8
    $region21: #{tpu_custom_call.1} parent=1 // pred_fallthru
      _
    // Predicated region
    $region22: #{tpu_custom_call.1} parent=1 // pred_check
      _
    $region23: #{tpu_custom_call.1} parent=1 // pred_check_branch
      %239 = sbr.rel (0) target = $region25
    $region24: #{tpu_custom_call.1} parent=1 // pred_region
      %241 = dma.done [#allocation4], 1024
    $region25: #{tpu_custom_call.1} parent=1 // pred_fallthru
      _
    %242 = vsyncpa [#allocation3], 1
    %243 = vsyncpa [#allocation6], 1
    %244 = vsyncpa [#allocation4], 1

</llo_original>
